<compile_context>
chip_gen: v7x
topology: tpu7x:2x2x1
jax: 0.10.0
libtpu: 0.0.40
codegen_flags: <defaults>
</compile_context>

<pallas_src>
import functools
import math

import jax
import jax.numpy as jnp
from jax.experimental import pallas as pl
from jax.experimental.pallas import tpu as pltpu


def _round_up(x, m):
    return (x + m - 1) // m * m


# ----------------------------------------------------------------------------
# Generation-aware sizing helpers
# ----------------------------------------------------------------------------
def _vmem_limit_bytes():
    """Pick a scoped-VMEM limit from the actual chip (v7x: 64 MiB physical,
    v5e/v6e: 128 MiB).  Fallback is the conservative v7x figure."""
    cap = 64 * 1024 * 1024
    try:
        cap = int(pltpu.get_tpu_info().vmem_capacity_bytes)
    except Exception:
        pass
    return max(32 * 1024 * 1024, min(cap * 3 // 4, 96 * 1024 * 1024))


def _est_vmem_bytes(row_tile, W, W1, c4, c_out):
    """Conservative per-step VMEM estimate: double-buffered input/output blocks
    plus the fused-K operand and a few f32 full-tile temporaries (native
    (8,128)/(16,128) tiling padding included)."""
    bf16, f32 = 2, 4
    lane = lambda n: _round_up(n, 128)
    m = row_tile * W
    in_blk = (row_tile + 1) * _round_up(W1, 16) * lane(c4) * bf16
    out_blk = _round_up(m, 8) * lane(c_out) * f32
    k_op = _round_up(m, 16) * lane(4 * c4 + 1) * bf16
    acc = _round_up(m, 8) * lane(c_out) * f32
    return 2 * (in_blk + out_blk) + k_op + 3 * acc


def _pick_row_tile(H, W, W1, c4, c_out, batch, vmem_budget):
    """Largest divisor of H that (a) keeps the flattened output block
    sublane-aligned, (b) fits the VMEM budget, (c) leaves >= 2 grid steps when
    batch == 1 (v7x has 2 TensorCores)."""
    cands = [t for t in range(1, H + 1)
             if H % t == 0 and (t == H or (t * W) % 8 == 0)]
    if batch == 1:
        two_step = [t for t in cands if H // t >= 2]
        if two_step:
            cands = two_step
    fit = [t for t in cands if _est_vmem_bytes(t, W, W1, c4, c_out) <= vmem_budget]
    if fit:
        return max(fit)
    return min(cands)


# ----------------------------------------------------------------------------
# Kernel
# ----------------------------------------------------------------------------
def downsamples_kernel(x_ref, m_ref, g_ref, b_ref, o_ref, *, row_tile, W):
    """One (batch, row-tile) grid step.

    x_ref : (1, 1, TH+1, W+1, 4*C_in) bf16  pre-tiled space-to-depth rows
            (row 0 / col 0 of the padded image are zeros; last row is the halo)
    m_ref : (16*C_in + 1, C_out)       bf16  fused conv weight; last row = bias
    g_ref : (1, C_out) f32  LayerNorm gamma
    b_ref : (1, C_out) f32  LayerNorm beta
    o_ref : (1, TH*W, C_out) f32
    """
    TH = row_tile
    c4 = x_ref.shape[-1]
    xr = x_ref[0, 0]                                   # (TH+1, W+1, c4)

    # 3x3/stride-2 conv == 2x2 stride-1 VALID conv on the phase-packed image.
    # Build ONE fused MXU operand: four shifted tap views + a constant-one
    # column (folds the conv bias) concatenated on the lane axis.
    t00 = xr[0:TH, 0:W, :]
    t01 = xr[0:TH, 1:W + 1, :]
    t10 = xr[1:TH + 1, 0:W, :]
    t11 = xr[1:TH + 1, 1:W + 1, :]
    ones = jnp.ones((TH, W, 1), jnp.bfloat16)
    k_op = jnp.concatenate([t00, t01, t10, t11, ones], axis=-1)   # (TH, W, K)
    k_op = k_op.reshape(TH * W, 4 * c4 + 1)

    # Single MXU matmul, f32 accumulation (conv + bias).
    acc = jnp.dot(k_op, m_ref[...], preferred_element_type=jnp.float32)

    # LayerNorm over C_out, f32, shifted two-pass variance (PyTorch eps=1e-5).
    mean = jnp.mean(acc, axis=-1, keepdims=True)
    xc = acc - mean
    var = jnp.mean(xc * xc, axis=-1, keepdims=True)
    y = xc * jax.lax.rsqrt(var + 1e-5)
    o_ref[0] = (y * g_ref[...] + b_ref[...]).astype(o_ref.dtype)


# ----------------------------------------------------------------------------
# Wrapper-side layout plumbing
# ----------------------------------------------------------------------------
def _space_to_depth_pad(x_nchw, h, w):
    """(B, C, H_in, W_in) -> (B, h+1, w+1, 4*C) phase-packed, zero row/col on
    top/left, zero-padded bottom/right phases for odd spatial sizes."""
    b, c, h_in, w_in = x_nchw.shape
    x = jnp.transpose(x_nchw, (0, 2, 3, 1))                       # NHWC
    x = jnp.pad(x, ((0, 0), (0, 2 * h - h_in), (0, 2 * w - w_in), (0, 0)))
    x = x.reshape(b, h, 2, w, 2, c)
    x = jnp.transpose(x, (0, 1, 3, 2, 4, 5)).reshape(b, h, w, 4 * c)
    # channel blocks: [even-row/even-col, even/odd, odd/even, odd/odd]
    return jnp.pad(x, ((0, 0), (1, 0), (1, 0), (0, 0)))           # (B, h+1, w+1, 4C)


def _pack_conv_weight_fused(w_oihw, conv_b):
    """(C_out, C_in, 3, 3), (C_out,) -> (16*C_in + 1, C_out) for the fused
    single-matmul 2x2 form; the last K row carries the conv bias (multiplied
    by the kernel's constant-one column)."""
    c_out, c_in = w_oihw.shape[:2]
    c4 = 4 * c_in
    m = jnp.zeros((4 * c4 + 1, c_out), jnp.float32)
    # (tap_dh, tap_dw, phase, kernel_kh, kernel_kw); phases: 0=ee 1=eo 2=oe 3=oo
    table = [
        (0, 0, 3, 0, 0),
        (0, 1, 2, 0, 1), (0, 1, 3, 0, 2),
        (1, 0, 1, 1, 0), (1, 0, 3, 2, 0),
        (1, 1, 0, 1, 1), (1, 1, 1, 1, 2), (1, 1, 2, 2, 1), (1, 1, 3, 2, 2),
    ]
    for th, tw, ph, kh, kw in table:
        blk = w_oihw[:, :, kh, kw].T                              # (C_in, C_out)
        row0 = (2 * th + tw) * c4 + ph * c_in
        m = m.at[row0:row0 + c_in, :].set(blk)
    m = m.at[4 * c4, :].set(conv_b)
    return m


def downsamples(x, conv_w, conv_b, ln_gamma, ln_beta, *, row_tile=None,
                vmem_limit_bytes=None):
    """DownSamples forward.  x: (B, C_in, H_in, W_in) f32 (NCHW).
    Returns (y, H, W) with y: (B, H*W, C_out) f32."""
    B, c_in, h_in, w_in = x.shape
    c_out = conv_w.shape[0]
    H, W = (h_in + 1) // 2, (w_in + 1) // 2
    N = H * W
    c4 = 4 * c_in
    W1 = W + 1
    K = 4 * c4 + 1

    if vmem_limit_bytes is None:
        vmem_limit_bytes = _vmem_limit_bytes()
    if row_tile is None:
        row_tile = _pick_row_tile(H, W, W1, c4, c_out, B,
                                  int(vmem_limit_bytes * 0.6))
    assert H % row_tile == 0
    assert row_tile == H or (row_tile * W) % 8 == 0
    n_tiles = H // row_tile

    # Space-to-depth (bf16) + pre-tiled non-overlapping blocks with a
    # duplicated 1-row halo per tile -> no in-kernel stitch, single input DMA
    # stream.  All of this fuses into one wrapper HBM pass under jit.
    x_s2d = _space_to_depth_pad(x.astype(jnp.bfloat16), H, W)     # (B,H+1,W1,c4)
    main = x_s2d[:, :H].reshape(B, n_tiles, row_tile, W1, c4)
    halo = x_s2d[:, row_tile::row_tile].reshape(B, n_tiles, 1, W1, c4)
    x_t = jnp.concatenate([main, halo], axis=2)                   # (B,nt,TH+1,W1,c4)

    # Static per-layer repack (in a real model: computed once at load time).
    m = _pack_conv_weight_fused(conv_w, conv_b).astype(jnp.bfloat16)
    gamma = ln_gamma.reshape(1, c_out).astype(jnp.float32)
    beta = ln_beta.reshape(1, c_out).astype(jnp.float32)

    kernel = functools.partial(downsamples_kernel, row_tile=row_tile, W=W)
    out = pl.pallas_call(
        kernel,
        out_shape=jax.ShapeDtypeStruct((B, N, c_out), jnp.float32),
        grid=(B, n_tiles),
        in_specs=[
            pl.BlockSpec((1, 1, row_tile + 1, W1, c4),
                         lambda b, i: (b, i, 0, 0, 0)),
            pl.BlockSpec((K, c_out), lambda b, i: (0, 0)),
            pl.BlockSpec((1, c_out), lambda b, i: (0, 0)),
            pl.BlockSpec((1, c_out), lambda b, i: (0, 0)),
        ],
        out_specs=pl.BlockSpec((1, row_tile * W, c_out), lambda b, i: (b, i, 0)),
        compiler_params=pltpu.CompilerParams(
            dimension_semantics=("parallel", "parallel"),
            vmem_limit_bytes=int(vmem_limit_bytes)),
    )(x_t, m, gamma, beta)
    return out, H, W


downsamples_jit = jax.jit(downsamples,
                          static_argnames=("row_tile", "vmem_limit_bytes"))


# ----------------------------------------------------------------------------
# Pure-JAX reference (matches the PyTorch forward)
# ----------------------------------------------------------------------------
def _reference(x, conv_w, conv_b, gamma, beta):
    B = x.shape[0]
    c_out = conv_w.shape[0]
    y = jax.lax.conv_general_dilated(
        x, conv_w, window_strides=(2, 2), padding=((1, 1), (1, 1)),
        dimension_numbers=("NCHW", "OIHW", "NCHW"),
        precision=jax.lax.Precision.HIGHEST)
    y = y + conv_b.reshape(1, c_out, 1, 1)
    _, _, H, W = y.shape
    y = y.reshape(B, c_out, H * W).transpose(0, 2, 1)             # (B, N, C_out)
    mean = jnp.mean(y, axis=-1, keepdims=True)
    var = jnp.mean((y - mean) ** 2, axis=-1, keepdims=True)
    y = (y - mean) / jnp.sqrt(var + 1e-5) * gamma + beta
    return y, H, W


if __name__ == "__main__":
    B, C_in, H_in, W_in = 2, 4, 16, 16
    C_out = 32

    key = jax.random.PRNGKey(0)
    kx, kw, kb, kg, kbt = jax.random.split(key, 5)
    x = jax.random.normal(kx, (B, C_in, H_in, W_in), jnp.float32)

    # Module init: Conv2d weight ~ N(0, sqrt(2/fan_out)), fan_out = 3*3*C_out,
    # conv bias = 0; LayerNorm weight = 1, bias = 0.
    std = math.sqrt(2.0 / (3 * 3 * C_out))
    conv_w = jax.random.normal(kw, (C_out, C_in, 3, 3), jnp.float32) * std
    conv_b = jnp.zeros((C_out,), jnp.float32)
    gamma = jnp.ones((C_out,), jnp.float32)
    beta = jnp.zeros((C_out,), jnp.float32)

    def check(out, ref, tag):
        if not jnp.allclose(out, ref, atol=2e-2, rtol=2e-2):
            err = float(jnp.max(jnp.abs(out - ref)))
            raise AssertionError(f"{tag}: mismatch vs reference (max err {err})")

    # 1) module-init parameters, auto tile/VMEM selection.
    out, H, W = downsamples_jit(x, conv_w, conv_b, gamma, beta)
    out = jax.block_until_ready(out)
    ref, H_ref, W_ref = _reference(x, conv_w, conv_b, gamma, beta)
    assert (H, W) == (H_ref, W_ref), (H, W, H_ref, W_ref)
    check(out, ref, "auto-tile")

    # 2) non-trivial bias/gamma/beta + explicit small row_tile to exercise the
    #    multi-tile halo path and the folded-bias K row.
    conv_b2 = 0.1 * jax.random.normal(kb, (C_out,), jnp.float32)
    gamma2 = 1.0 + 0.1 * jax.random.normal(kg, (C_out,), jnp.float32)
    beta2 = 0.1 * jax.random.normal(kbt, (C_out,), jnp.float32)
    out2, _, _ = downsamples_jit(x, conv_w, conv_b2, gamma2, beta2, row_tile=2)
    out2 = jax.block_until_ready(out2)
    ref2, _, _ = _reference(x, conv_w, conv_b2, gamma2, beta2)
    check(out2, ref2, "row_tile=2")

    print("KERNEL_OK")
</pallas_src>

<mosaic_0001>
module attributes {stable_mosaic.version = 11 : i64} {
  func.func @downsamples_kernel(%arg0: i32, %arg1: i32, %arg2: memref<1x1x9x9x16xbf16, #tpu.memory_space<vmem>>, %arg3: memref<65x32xbf16, #tpu.memory_space<vmem>>, %arg4: memref<1x32xf32, #tpu.memory_space<vmem>>, %arg5: memref<1x32xf32, #tpu.memory_space<vmem>>, %arg6: memref<1x64x32xf32, #tpu.memory_space<vmem>>) attributes {dimension_semantics = [#tpu.dimension_semantics<parallel>, #tpu.dimension_semantics<parallel>], iteration_bounds = array<i64: 2, 1>, scalar_prefetch = 0 : i64, scratch_operands = 0 : i64, tpu.core_type = #tpu.core_type<tc>, window_params = [{transform_indices = @transform_0, window_bounds = array<i64: 1, 1, 9, 9, 16>}, {pipeline_mode = #tpu.pipeline_mode<synchronous>, transform_indices = @transform_1, window_bounds = array<i64: 65, 32>}, {pipeline_mode = #tpu.pipeline_mode<synchronous>, transform_indices = @transform_2, window_bounds = array<i64: 1, 32>}, {pipeline_mode = #tpu.pipeline_mode<synchronous>, transform_indices = @transform_3, window_bounds = array<i64: 1, 32>}, {transform_indices = @transform_4, window_bounds = array<i64: 1, 64, 32>}]} {
    %c0 = arith.constant 0 : index
    %c0_0 = arith.constant 0 : index
    %c0_1 = arith.constant 0 : index
    %c0_2 = arith.constant 0 : index
    %c0_3 = arith.constant 0 : index
    %0 = vector.load %arg2[%c0, %c0_0, %c0_1, %c0_2, %c0_3] : memref<1x1x9x9x16xbf16, #tpu.memory_space<vmem>>, vector<1x1x9x9x16xbf16>
    %1 = vector.shape_cast %0 : vector<1x1x9x9x16xbf16> to vector<9x9x16xbf16>
    %2 = vector.extract_strided_slice %1 {offsets = [0, 0, 0], sizes = [8, 8, 16], strides = [1, 1, 1]} : vector<9x9x16xbf16> to vector<8x8x16xbf16>
    %3 = vector.extract_strided_slice %1 {offsets = [0, 1, 0], sizes = [8, 8, 16], strides = [1, 1, 1]} : vector<9x9x16xbf16> to vector<8x8x16xbf16>
    %4 = vector.extract_strided_slice %1 {offsets = [1, 0, 0], sizes = [8, 8, 16], strides = [1, 1, 1]} : vector<9x9x16xbf16> to vector<8x8x16xbf16>
    %5 = vector.extract_strided_slice %1 {offsets = [1, 1, 0], sizes = [8, 8, 16], strides = [1, 1, 1]} : vector<9x9x16xbf16> to vector<8x8x16xbf16>
    %cst = arith.constant 1.000000e+00 : bf16
    %6 = vector.broadcast %cst : bf16 to vector<8x8x1xbf16>
    %7 = tpu.concatenate %2, %3, %4, %5, %6 in 2 : vector<8x8x16xbf16>, vector<8x8x16xbf16>, vector<8x8x16xbf16>, vector<8x8x16xbf16>, vector<8x8x1xbf16> -> vector<8x8x65xbf16>
    %8 = vector.shape_cast %7 : vector<8x8x65xbf16> to vector<64x65xbf16>
    %c0_4 = arith.constant 0 : index
    %c0_5 = arith.constant 0 : index
    %9 = vector.load %arg3[%c0_4, %c0_5] : memref<65x32xbf16, #tpu.memory_space<vmem>>, vector<65x32xbf16>
    %cst_6 = arith.constant dense<0.000000e+00> : vector<64x32xf32>
    %10 = tpu.matmul %8, %9, %cst_6 {dimension_numbers = #tpu.dot_dimension_numbers<[1], [0], [0], [1], [0, 0, 1, 1], [], []>} : vector<64x65xbf16>, vector<65x32xbf16>, vector<64x32xf32> -> vector<64x32xf32>
    %cst_7 = arith.constant dense<0.000000e+00> : vector<64xf32>
    %11 = vector.multi_reduction <add>, %10, %cst_7 [1] : vector<64x32xf32> to vector<64xf32>
    %12 = vector.shape_cast %11 : vector<64xf32> to vector<64x1xf32>
    %cst_8 = arith.constant 3.200000e+01 : f32
    %13 = vector.broadcast %cst_8 : f32 to vector<64x1xf32>
    %14 = arith.divf %12, %13 : vector<64x1xf32>
    %15 = vector.broadcast %14 : vector<64x1xf32> to vector<64x32xf32>
    %16 = arith.subf %10, %15 : vector<64x32xf32>
    %17 = arith.mulf %16, %16 : vector<64x32xf32>
    %cst_9 = arith.constant dense<0.000000e+00> : vector<64xf32>
    %18 = vector.multi_reduction <add>, %17, %cst_9 [1] : vector<64x32xf32> to vector<64xf32>
    %19 = vector.shape_cast %18 : vector<64xf32> to vector<64x1xf32>
    %cst_10 = arith.constant 3.200000e+01 : f32
    %20 = vector.broadcast %cst_10 : f32 to vector<64x1xf32>
    %21 = arith.divf %19, %20 : vector<64x1xf32>
    %cst_11 = arith.constant 9.99999974E-6 : f32
    %22 = vector.broadcast %cst_11 : f32 to vector<64x1xf32>
    %23 = arith.addf %21, %22 : vector<64x1xf32>
    %24 = math.rsqrt %23 : vector<64x1xf32>
    %25 = vector.broadcast %24 : vector<64x1xf32> to vector<64x32xf32>
    %26 = arith.mulf %16, %25 : vector<64x32xf32>
    %c0_12 = arith.constant 0 : index
    %c0_13 = arith.constant 0 : index
    %27 = vector.load %arg4[%c0_12, %c0_13] : memref<1x32xf32, #tpu.memory_space<vmem>>, vector<1x32xf32>
    %28 = vector.broadcast %27 : vector<1x32xf32> to vector<64x32xf32>
    %29 = arith.mulf %26, %28 : vector<64x32xf32>
    %c0_14 = arith.constant 0 : index
    %c0_15 = arith.constant 0 : index
    %30 = vector.load %arg5[%c0_14, %c0_15] : memref<1x32xf32, #tpu.memory_space<vmem>>, vector<1x32xf32>
    %31 = vector.broadcast %30 : vector<1x32xf32> to vector<64x32xf32>
    %32 = arith.addf %29, %31 : vector<64x32xf32>
    %c0_16 = arith.constant 0 : index
    %c0_17 = arith.constant 0 : index
    %c0_18 = arith.constant 0 : index
    %33 = vector.load %arg6[%c0_16, %c0_17, %c0_18] : memref<1x64x32xf32, #tpu.memory_space<vmem>>, vector<1x64x32xf32>
    %34 = vector.shape_cast %33 : vector<1x64x32xf32> to vector<64x32xf32>
    %35 = vector.shape_cast %32 : vector<64x32xf32> to vector<1x64x32xf32>
    tpu.vector_store %arg6[%c0_16, %c0_17, %c0_18], %35 {strides = array<i32>} : memref<1x64x32xf32, #tpu.memory_space<vmem>>, vector<1x64x32xf32>,
    return
  }
  func.func @transform_0(%arg0: i32, %arg1: i32) -> (i32, i32, i32, i32, i32) {
    %c0_i32 = arith.constant 0 : i32
    %c0_i32_0 = arith.constant 0 : i32
    %c0_i32_1 = arith.constant 0 : i32
    %c0_i32_2 = arith.constant 0 : i32
    return %arg0, %arg1, %c0_i32, %c0_i32_0, %c0_i32_1 : i32, i32, i32, i32, i32
  }
  func.func @transform_1(%arg0: i32, %arg1: i32) -> (i32, i32) {
    %c0_i32 = arith.constant 0 : i32
    %c0_i32_0 = arith.constant 0 : i32
    %c0_i32_1 = arith.constant 0 : i32
    return %c0_i32, %c0_i32_0 : i32, i32
  }
  func.func @transform_2(%arg0: i32, %arg1: i32) -> (i32, i32) {
    %c0_i32 = arith.constant 0 : i32
    %c0_i32_0 = arith.constant 0 : i32
    %c0_i32_1 = arith.constant 0 : i32
    return %c0_i32, %c0_i32_0 : i32, i32
  }
  func.func @transform_3(%arg0: i32, %arg1: i32) -> (i32, i32) {
    %c0_i32 = arith.constant 0 : i32
    %c0_i32_0 = arith.constant 0 : i32
    %c0_i32_1 = arith.constant 0 : i32
    return %c0_i32, %c0_i32_0 : i32, i32
  }
  func.func @transform_4(%arg0: i32, %arg1: i32) -> (i32, i32, i32) {
    %c0_i32 = arith.constant 0 : i32
    %c0_i32_0 = arith.constant 0 : i32
    return %arg0, %arg1, %c0_i32 : i32, i32, i32
  }
}

</mosaic_0001>

<llo_original>
// kernel: downsamples.1
$region0: #{downsamples.1}
  #allocation0 [shape = 'u32[]', space=smem, size = 0x4, offset = 0x4, fixed_abs, tag = 'smem constant byte address 0x4 - core index']
  #allocation1 [shape = 'u32[144,128]{1,0:T(1,128)}', space=vmem, size = 0x12000, scoped, tag = 'internal scratch']
  %s0 = inlined_call_operand.vmem [shape: bf16[2,1,9,9,16], index: 0, kind: input, shape index: {}]
  %s1 = inlined_call_operand.vmem [shape: bf16[65,32], index: 1, kind: input, shape index: {}]
  %s2 = inlined_call_operand.vmem [shape: f32[1,32], index: 2, kind: input, shape index: {}]
  %s3 = inlined_call_operand.vmem [shape: f32[1,32], index: 3, kind: input, shape index: {}]
  %s4 = inlined_call_operand.vmem [shape: f32[2,64,32], index: 4, kind: output, shape index: {}]
  %s5 = sld [smem:[#allocation0]]
  $region49: #{downsamples.1} parent=0
    _
  %s7 = ssub.s32 1, %s5
  %s8 = scalar_select 0, %s7, %s5
  loop: start=0, step=1, limit=4
  $region2: #{downsamples.1} parent=0 // loop_pre_header
    _
  $region3: #{downsamples.1} parent=0 // loop_header
    %s10 = sphi 0, %s14
    %p11 = scmp.ge.s32.totalorder %s10, 4
    %s17 = sphi 0, %s29
    %s18 = sphi 0, %s25
    %s19 = sphi 0, %s17
    %s20 = sphi 0, %s18
    %s21 = sphi 0, %s19
    %s22 = sphi 0, %s20
    %s34 = sphi 0, %s36
    %s37 = sphi 0, %s34
    %s38 = sphi 0, %s37
    %s54 = sphi 0, %s38
    %s58 = sphi 0, %s58
    %s60 = sphi 0, %s58
    %s61 = sphi 0, %s60
    %s75 = sphi 0, %s61
    %s79 = sphi 0, %s79
    %s81 = sphi 0, %s79
    %s82 = sphi 0, %s81
    %s96 = sphi 0, %s82
    %s100 = sphi 0, %s100
    %s102 = sphi 0, %s100
    %s103 = sphi 0, %s102
    %s117 = sphi 0, %s103
    %s125 = sphi 0, %s127
    %s128 = sphi 0, %s125
    %s129 = sphi 0, %s128
    %s145 = sphi 0, %s129
  $region4: #{downsamples.1} parent=0 // loop_header_branch
    %13 = sbr.rel (%p11) target = $region8
  $region5: #{downsamples.1} parent=0 // loop_body
    %s15 = ssub.s32 %s10, 1
    %s16 = ssub.s32 %s10, 2
    %s23 = sadd.s32 1, %s18
    %p24 = scmp.ge.s32.totalorder %s23, 1
    %s25 = scalar_select %p24, 0, %s23
    %s26 = sadd.s32 1, %s17
    %s27 = scalar_select %p24, %s26, %s17
    %p28 = scmp.ge.s32.totalorder %s27, 2
    %s29 = scalar_select %p28, 0, %s27
    %s30 = ssub.s32 %s17, %s29
    %s31 = ssub.s32 %s18, %s25
    %s32 = sor.u32 %s30, %s31
    %p33 = scmp.eq.s32.totalorder %s32, 0
    %s35 = sadd.s32 %s34, 1
    %s36 = scalar_select %p33, %s34, %s35
    %p39 = pneg %p33
    %p40 = scmp.eq.s32.totalorder %s10, 1
    %p41 = por %p39, %p40
    %p42 = scmp.ne.s32.totalorder %s34, %s37
    %p43 = scmp.eq.s32.totalorder %s10, 0
    %p44 = por %p42, %p43
    %p45 = scmp.ne.s32.totalorder %s34, %s37
    %p46 = scmp.eq.s32.totalorder %s15, 1
    %p47 = por %p45, %p46
    %p48 = scmp.ne.s32.totalorder %s37, %s38
    %p49 = scmp.eq.s32.totalorder %s15, 0
    %p50 = por %p48, %p49
    %p51 = scmp.ne.s32.totalorder %s37, %s38
    %p52 = scmp.eq.s32.totalorder %s16, 1
    %p53 = por %p51, %p52
    %p55 = scmp.ne.s32.totalorder %s38, %s54
    %p56 = scmp.eq.s32.totalorder %s16, 0
    %p57 = por %p55, %p56
    %s59 = sadd.s32 %s58, 1
    %p62 = scmp.eq.s32.totalorder %s10, 1
    %p63 = scmp.ne.s32.totalorder %s58, %s60
    %p64 = scmp.eq.s32.totalorder %s10, 0
    %p65 = por %p63, %p64
    %p66 = scmp.ne.s32.totalorder %s58, %s60
    %p67 = scmp.eq.s32.totalorder %s15, 1
    %p68 = por %p66, %p67
    %p69 = scmp.ne.s32.totalorder %s60, %s61
    %p70 = scmp.eq.s32.totalorder %s15, 0
    %p71 = por %p69, %p70
    %p72 = scmp.ne.s32.totalorder %s60, %s61
    %p73 = scmp.eq.s32.totalorder %s16, 1
    %p74 = por %p72, %p73
    %p76 = scmp.ne.s32.totalorder %s61, %s75
    %p77 = scmp.eq.s32.totalorder %s16, 0
    %p78 = por %p76, %p77
    %s80 = sadd.s32 %s79, 1
    %p83 = scmp.eq.s32.totalorder %s10, 1
    %p84 = scmp.ne.s32.totalorder %s79, %s81
    %p85 = scmp.eq.s32.totalorder %s10, 0
    %p86 = por %p84, %p85
    %p87 = scmp.ne.s32.totalorder %s79, %s81
    %p88 = scmp.eq.s32.totalorder %s15, 1
    %p89 = por %p87, %p88
    %p90 = scmp.ne.s32.totalorder %s81, %s82
    %p91 = scmp.eq.s32.totalorder %s15, 0
    %p92 = por %p90, %p91
    %p93 = scmp.ne.s32.totalorder %s81, %s82
    %p94 = scmp.eq.s32.totalorder %s16, 1
    %p95 = por %p93, %p94
    %p97 = scmp.ne.s32.totalorder %s82, %s96
    %p98 = scmp.eq.s32.totalorder %s16, 0
    %p99 = por %p97, %p98
    %s101 = sadd.s32 %s100, 1
    %p104 = scmp.eq.s32.totalorder %s10, 1
    %p105 = scmp.ne.s32.totalorder %s100, %s102
    %p106 = scmp.eq.s32.totalorder %s10, 0
    %p107 = por %p105, %p106
    %p108 = scmp.ne.s32.totalorder %s100, %s102
    %p109 = scmp.eq.s32.totalorder %s15, 1
    %p110 = por %p108, %p109
    %p111 = scmp.ne.s32.totalorder %s102, %s103
    %p112 = scmp.eq.s32.totalorder %s15, 0
    %p113 = por %p111, %p112
    %p114 = scmp.ne.s32.totalorder %s102, %s103
    %p115 = scmp.eq.s32.totalorder %s16, 1
    %p116 = por %p114, %p115
    %p118 = scmp.ne.s32.totalorder %s103, %s117
    %p119 = scmp.eq.s32.totalorder %s16, 0
    %p120 = por %p118, %p119
    %s121 = ssub.s32 %s17, %s29
    %s122 = ssub.s32 %s18, %s25
    %s123 = sor.u32 %s121, %s122
    %p124 = scmp.eq.s32.totalorder %s123, 0
    %s126 = sadd.s32 %s125, 1
    %s127 = scalar_select %p124, %s125, %s126
    %p130 = pneg %p124
    %p131 = scmp.eq.s32.totalorder %s10, 1
    %p132 = por %p130, %p131
    %p133 = scmp.ne.s32.totalorder %s125, %s128
    %p134 = scmp.eq.s32.totalorder %s10, 0
    %p135 = por %p133, %p134
    %p136 = scmp.ne.s32.totalorder %s125, %s128
    %p137 = scmp.eq.s32.totalorder %s15, 1
    %p138 = por %p136, %p137
    %p139 = scmp.ne.s32.totalorder %s128, %s129
    %p140 = scmp.eq.s32.totalorder %s15, 0
    %p141 = por %p139, %p140
    %p142 = scmp.ne.s32.totalorder %s128, %s129
    %p143 = scmp.eq.s32.totalorder %s16, 1
    %p144 = por %p142, %p143
    %p146 = scmp.ne.s32.totalorder %s129, %s145
    %p147 = scmp.eq.s32.totalorder %s16, 0
    %p148 = por %p146, %p147
    %p149 = scmp.le.s32.totalorder 1, %s10
    %p150 = scmp.lt.s32.totalorder %s10, 3
    %p151 = pnand %p149, %p150
    %p152 = pneg %p151
    // Predicated region
    $region9: #{downsamples.1} parent=5 // pred_check
      _
    $region10: #{downsamples.1} parent=5 // pred_check_branch
      %154 = sbr.rel (%p151) target = $region12
    $region11: #{downsamples.1} parent=5 // pred_region
      %s155 = ssub.s32 %s10, 1
      // Predicated region
      $region13: #{downsamples.1} parent=11 // pred_check
        %p156 = pneg %p71
      $region14: #{downsamples.1} parent=11 // pred_check_branch
        %158 = sbr.rel (%p156) target = $region16
      $region15: #{downsamples.1} parent=11 // pred_region
        _
      $region16: #{downsamples.1} parent=11 // pred_fallthru
        _
      // Predicated region
      $region17: #{downsamples.1} parent=11 // pred_check
        %p159 = pneg %p92
      $region18: #{downsamples.1} parent=11 // pred_check_branch
        %161 = sbr.rel (%p159) target = $region20
      $region19: #{downsamples.1} parent=11 // pred_region
        _
      $region20: #{downsamples.1} parent=11 // pred_fallthru
        _
      // Predicated region
      $region21: #{downsamples.1} parent=11 // pred_check
        %p162 = pneg %p113
      $region22: #{downsamples.1} parent=11 // pred_check_branch
        %164 = sbr.rel (%p162) target = $region24
      $region23: #{downsamples.1} parent=11 // pred_region
        _
      $region24: #{downsamples.1} parent=11 // pred_fallthru
        _
    $region12: #{downsamples.1} parent=5 // pred_fallthru
      _
    %p165 = scmp.lt.s32.totalorder %s10, 2
    // Predicated region
    $region25: #{downsamples.1} parent=5 // pred_check
      %p166 = pneg %p165
    $region26: #{downsamples.1} parent=5 // pred_check_branch
      %168 = sbr.rel (%p166) target = $region28
    $region27: #{downsamples.1} parent=5 // pred_region
      // Predicated region
      $region29: #{downsamples.1} parent=27 // pred_check
        %p169 = pneg %p44
      $region30: #{downsamples.1} parent=27 // pred_check_branch
        %171 = sbr.rel (%p169) target = $region32
      $region31: #{downsamples.1} parent=27 // pred_region
        %p172 = scmp.lt.s32.totalorder %s17, 1
        %s173 = scalar_select %p172, %s17, 1
        %p174 = scmp.lt.s32.totalorder %s18, 0
        %s175 = scalar_select %p174, %s18, 0
        %s176 = smul.addr %s175, 18
        %s177 = smul.addr %s173, 18
        %s178 = sadd.s32 %s176, %s177
        %s179 = smul.addr %s178, 4
        %s180 = scalar_lea.vmem %s0, %s179
      $region32: #{downsamples.1} parent=27 // pred_fallthru
        _
    $region28: #{downsamples.1} parent=5 // pred_fallthru
      _
    %p181 = scmp.le.s32.totalorder 1, %s10
    %p182 = scmp.lt.s32.totalorder %s10, 3
    %p183 = pnand %p181, %p182
    %p184 = pneg %p183
    // Predicated region
    $region33: #{downsamples.1} parent=5 // pred_check
      _
    $region34: #{downsamples.1} parent=5 // pred_check_branch
      %186 = sbr.rel (%p183) target = $region36
    $region35: #{downsamples.1} parent=5 // pred_region
      %s187 = ssub.s32 %s10, 1
      %p188 = scmp.lt.s32.totalorder %s19, 1
      %s189 = scalar_select %p188, %s19, 1
      %p190 = scmp.lt.s32.totalorder %s20, 0
      %s191 = scalar_select %p190, %s20, 0
      %s192 = smul.addr %s191, 18
      %s193 = smul.addr %s189, 18
      %s194 = sadd.s32 %s192, %s193
      %s195 = smul.addr %s194, 4
      %s196 = scalar_lea.vmem %s0, %s195
      %p197 = pneg %p50
      %p198 = pneg %p47
      %p199 = pneg %p71
      %p200 = pneg %p68
      %p201 = pneg %p92
      %p202 = pneg %p89
      %p203 = pneg %p113
      %p204 = pneg %p110
      %p205 = pneg %p141
      %p206 = pneg %p138
      %s207 = smul.u32 8, %s20
      %p208 = scmp.lt.s32.totalorder %s19, 1
      %s209 = scalar_select %p208, %s19, 1
      %p210 = scmp.lt.s32.totalorder %s207, 7
      %s211 = scalar_select %p210, %s207, 7
      %s212 = smul.addr %s209, 8
      %s213 = sadd.s32 %s211, %s212
      %s214 = smul.addr %s213, 8
      %s215 = scalar_lea.vmem %s4, %s214
      %p216 = scmp.lt.s32.totalorder %s19, 1
      %s217 = scalar_select %p216, %s19, 1
      %p218 = scmp.lt.s32.totalorder %s20, 0
      %s219 = scalar_select %p218, %s20, 0
      %s220 = smul.addr %s219, 18
      %s221 = smul.addr %s217, 18
      %s222 = sadd.s32 %s220, %s221
      %s223 = smul.addr %s222, 4
      %s224 = scalar_lea.vmem %s0, %s223
      %s225 = smul.u32 8, %s20
      %p226 = scmp.lt.s32.totalorder %s19, 1
      %s227 = scalar_select %p226, %s19, 1
      %p228 = scmp.lt.s32.totalorder %s225, 7
      %s229 = scalar_select %p228, %s225, 7
      %s230 = smul.addr %s227, 8
      %s231 = sadd.s32 %s229, %s230
      %s232 = smul.addr %s231, 8
      %s233 = scalar_lea.vmem %s4, %s232
      %s234 = smul.u32 8, %s20
      %v237 = vld [vmem:[%s224] sm:$0xf]
      %v238 = vld [vmem:[%s224 + $0x4] sm:$0x1]
      %v239 = vld [vmem:[%s224 + $0x8] sm:$0xf]
      %v240 = vld [vmem:[%s224 + $0xc] sm:$0x1]
      %v241 = vld [vmem:[%s224 + $0x10] sm:$0xf]
      %v242 = vld [vmem:[%s224 + $0x14] sm:$0x1]
      %v243 = vld [vmem:[%s224 + $0x18] sm:$0xf]
      %v244 = vld [vmem:[%s224 + $0x1c] sm:$0x1]
      %v245 = vld [vmem:[%s224 + $0x20] sm:$0xf]
      %v246 = vld [vmem:[%s224 + $0x24] sm:$0x1]
      %v247 = vld [vmem:[%s224 + $0x28] sm:$0xf]
      %v248 = vld [vmem:[%s224 + $0x2c] sm:$0x1]
      %v249 = vld [vmem:[%s224 + $0x30] sm:$0xf]
      %v250 = vld [vmem:[%s224 + $0x34] sm:$0x1]
      %v251 = vld [vmem:[%s224 + $0x38] sm:$0xf]
      %v252 = vld [vmem:[%s224 + $0x3c] sm:$0x1]
      %v253 = vld [vmem:[%s224 + $0x40] sm:$0xf]
      %v254 = vld [vmem:[%s224 + $0x44] sm:$0x1]
      %v271 = vunpack.c.l.b16 %v237
      %v272 = vunpack.c.l.b16 %v238
      %v273 = vunpack.c.l.b16 %v239
      %v274 = vunpack.c.l.b16 %v240
      %v275 = vunpack.c.l.b16 %v241
      %v276 = vunpack.c.l.b16 %v242
      %v277 = vunpack.c.l.b16 %v243
      %v278 = vunpack.c.l.b16 %v244
      %v279 = vunpack.c.l.b16 %v245
      %v280 = vunpack.c.l.b16 %v246
      %v281 = vunpack.c.l.b16 %v247
      %v282 = vunpack.c.l.b16 %v248
      %v283 = vunpack.c.l.b16 %v249
      %v284 = vunpack.c.l.b16 %v250
      %v285 = vunpack.c.l.b16 %v251
      %v286 = vunpack.c.l.b16 %v252
      %v287 = vpack.c.b16 %v272, %v271
      %v288 = vpack.c.b16 %v274, %v273
      %v289 = vpack.c.b16 %v276, %v275
      %v290 = vpack.c.b16 %v278, %v277
      %v291 = vpack.c.b16 %v280, %v279
      %v292 = vpack.c.b16 %v282, %v281
      %v293 = vpack.c.b16 %v284, %v283
      %v294 = vpack.c.b16 %v286, %v285
      %v296 = vshrl.u32 %v287, 16
      %v298 = vshll.u32 %v287, 16
      %v300 = vrot.slane %v298, 1
      %v301 = vor.u32 %v296, %v300
      %v303 = vshrl.u32 %v288, 16
      %v305 = vshll.u32 %v288, 16
      %v307 = vrot.slane %v305, 1
      %v308 = vor.u32 %v303, %v307
      %v310 = vshrl.u32 %v289, 16
      %v312 = vshll.u32 %v289, 16
      %v314 = vrot.slane %v312, 1
      %v315 = vor.u32 %v310, %v314
      %v317 = vshrl.u32 %v290, 16
      %v319 = vshll.u32 %v290, 16
      %v321 = vrot.slane %v319, 1
      %v322 = vor.u32 %v317, %v321
      %v324 = vshrl.u32 %v291, 16
      %v326 = vshll.u32 %v291, 16
      %v328 = vrot.slane %v326, 1
      %v329 = vor.u32 %v324, %v328
      %v331 = vshrl.u32 %v292, 16
      %v333 = vshll.u32 %v292, 16
      %v335 = vrot.slane %v333, 1
      %v336 = vor.u32 %v331, %v335
      %v338 = vshrl.u32 %v293, 16
      %v340 = vshll.u32 %v293, 16
      %v342 = vrot.slane %v340, 1
      %v343 = vor.u32 %v338, %v342
      %v345 = vshrl.u32 %v294, 16
      %v347 = vshll.u32 %v294, 16
      %v349 = vrot.slane %v347, 1
      %v350 = vor.u32 %v345, %v349
      %351 = vrot.lane.b32.xlu0 %v301, 16
      %v352 = vpop.permute.xlu0 %351
      %353 = vrot.lane.b32.xlu0 %v308, 16
      %v354 = vpop.permute.xlu0 %353
      %355 = vrot.lane.b32.xlu0 %v315, 16
      %v356 = vpop.permute.xlu0 %355
      %357 = vrot.lane.b32.xlu0 %v322, 16
      %v358 = vpop.permute.xlu0 %357
      %359 = vrot.lane.b32.xlu0 %v329, 16
      %v360 = vpop.permute.xlu0 %359
      %361 = vrot.lane.b32.xlu0 %v336, 16
      %v362 = vpop.permute.xlu0 %361
      %363 = vrot.lane.b32.xlu0 %v343, 16
      %v364 = vpop.permute.xlu0 %363
      %365 = vrot.lane.b32.xlu0 %v350, 16
      %v366 = vpop.permute.xlu0 %365
      %v368 = vunpack.c.l.b16 %v253
      %v369 = vpack.c.b16 %v273, %v273
      %v370 = vpack.c.b16 %v275, %v275
      %v371 = vpack.c.b16 %v277, %v277
      %v372 = vpack.c.b16 %v279, %v279
      %v373 = vpack.c.b16 %v281, %v281
      %v374 = vpack.c.b16 %v283, %v283
      %v375 = vpack.c.b16 %v285, %v285
      %v376 = vpack.c.b16 %v368, %v368
      %377 = vrot.lane.b32.xlu0 %v369, 32
      %v378 = vpop.permute.xlu0 %377
      %379 = vrot.lane.b32.xlu0 %v370, 32
      %v380 = vpop.permute.xlu0 %379
      %381 = vrot.lane.b32.xlu0 %v371, 32
      %v382 = vpop.permute.xlu0 %381
      %383 = vrot.lane.b32.xlu0 %v372, 32
      %v384 = vpop.permute.xlu0 %383
      %385 = vrot.lane.b32.xlu0 %v373, 32
      %v386 = vpop.permute.xlu0 %385
      %387 = vrot.lane.b32.xlu0 %v374, 32
      %v388 = vpop.permute.xlu0 %387
      %389 = vrot.lane.b32.xlu0 %v375, 32
      %v390 = vpop.permute.xlu0 %389
      %391 = vrot.lane.b32.xlu0 %v376, 32
      %v392 = vpop.permute.xlu0 %391
      %v394 = vunpack.c.l.b16 %v254
      %v395 = vpack.c.b16 %v394, %v368
      %v397 = vshrl.u32 %v395, 16
      %v399 = vshll.u32 %v395, 16
      %v401 = vrot.slane %v399, 1
      %v402 = vor.u32 %v397, %v401
      %403 = vrot.lane.b32.xlu0 %v308, 48
      %v404 = vpop.permute.xlu0 %403
      %405 = vrot.lane.b32.xlu0 %v315, 48
      %v406 = vpop.permute.xlu0 %405
      %407 = vrot.lane.b32.xlu0 %v322, 48
      %v408 = vpop.permute.xlu0 %407
      %409 = vrot.lane.b32.xlu0 %v329, 48
      %v410 = vpop.permute.xlu0 %409
      %411 = vrot.lane.b32.xlu0 %v336, 48
      %v412 = vpop.permute.xlu0 %411
      %413 = vrot.lane.b32.xlu0 %v343, 48
      %v414 = vpop.permute.xlu0 %413
      %415 = vrot.lane.b32.xlu0 %v350, 48
      %v416 = vpop.permute.xlu0 %415
      %417 = vrot.lane.b32.xlu0 %v402, 48
      %v418 = vpop.permute.xlu0 %417
      %vm419 = vcmask 130048
      %v422 = vsel %vm419, %v237, %v352
      %v425 = vsel %vm419, %v239, %v354
      %v428 = vsel %vm419, %v241, %v356
      %v431 = vsel %vm419, %v243, %v358
      %v434 = vsel %vm419, %v245, %v360
      %v437 = vsel %vm419, %v247, %v362
      %v440 = vsel %vm419, %v249, %v364
      %v443 = vsel %vm419, %v251, %v366
      %vm444 = vcmask 261120
      %v446 = vsel %vm444, %v422, %v378
      %v448 = vsel %vm444, %v425, %v380
      %v450 = vsel %vm444, %v428, %v382
      %v452 = vsel %vm444, %v431, %v384
      %v454 = vsel %vm444, %v434, %v386
      %v456 = vsel %vm444, %v437, %v388
      %v458 = vsel %vm444, %v440, %v390
      %v460 = vsel %vm444, %v443, %v392
      %vm461 = vcmask 392192
      %v463 = vsel %vm461, %v446, %v404
      %v465 = vsel %vm461, %v448, %v406
      %v467 = vsel %vm461, %v450, %v408
      %v469 = vsel %vm461, %v452, %v410
      %v471 = vsel %vm461, %v454, %v412
      %v473 = vsel %vm461, %v456, %v414
      %v475 = vsel %vm461, %v458, %v416
      %v477 = vsel %vm461, %v460, %v418
      %vm478 = vcmask 523264
      %v480 = vsel %vm478, %v463, 1065369472
      %v481 = vsel %vm478, %v465, 1065369472
      %v482 = vsel %vm478, %v467, 1065369472
      %v483 = vsel %vm478, %v469, 1065369472
      %v484 = vsel %vm478, %v471, 1065369472
      %v485 = vsel %vm478, %v473, 1065369472
      %v486 = vsel %vm478, %v475, 1065369472
      %v487 = vsel %vm478, %v477, 1065369472
      %v488 = vld [vmem:[%s1] sm:$0xf]
      %v489 = vld [vmem:[%s1 + $0x4] sm:$0xf]
      %v490 = vld [vmem:[%s1 + $0x8] sm:$0xf]
      %v491 = vld [vmem:[%s1 + $0xc] sm:$0xf]
      %v492 = vld [vmem:[%s1 + $0x10] sm:$0xf]
      %v493 = vld [vmem:[%s1 + $0x14] sm:$0xf]
      %v494 = vld [vmem:[%s1 + $0x18] sm:$0xf]
      %v495 = vld [vmem:[%s1 + $0x1c] sm:$0xf]
      %v496 = vld [vmem:[%s1 + $0x20] sm:$0x1]
      %v505 = vunpack.c.l.b16 %v480
      %v506 = vunpack.c.l.b16 %v481
      %v507 = vunpack.c.l.b16 %v482
      %v508 = vunpack.c.l.b16 %v483
      %v509 = vunpack.c.l.b16 %v484
      %v510 = vunpack.c.l.b16 %v485
      %v511 = vunpack.c.l.b16 %v486
      %v512 = vunpack.c.l.b16 %v487
      %v513 = vpack.c.b16 %v506, %v505
      %v514 = vpack.c.b16 %v508, %v507
      %v515 = vpack.c.b16 %v510, %v509
      %v516 = vpack.c.b16 %v512, %v511
      %v526 = vunpack.c.l.b16 %v488
      %v527 = vunpack.c.l.b16 %v489
      %v528 = vunpack.c.l.b16 %v490
      %v529 = vunpack.c.l.b16 %v491
      %v530 = vunpack.c.l.b16 %v492
      %v531 = vunpack.c.l.b16 %v493
      %v532 = vunpack.c.l.b16 %v494
      %v533 = vunpack.c.l.b16 %v495
      %v534 = vunpack.c.l.b16 %v496
      %v535 = vpack.c.b16 %v527, %v526
      %v536 = vpack.c.b16 %v529, %v528
      %v537 = vpack.c.b16 %v531, %v530
      %v538 = vpack.c.b16 %v533, %v532
      %v539 = vpack.c.b16 %v534, %v534
      %vm544 = vcmask 531456
      %v546 = vsel %vm544, %v513, 0
      %v549 = vsel %vm544, %v514, 0
      %v552 = vsel %vm544, %v515, 0
      %v555 = vsel %vm544, %v516, 0
      %vm557 = vcmask 1040384
      %v558 = vsel 0, 4294967295, 65535
      %v559 = vsel %vm557, %v558, 0
      %v561 = vand.u32 %v539, %v559
      %563 = vmatprep.subr.bf16.mxu0 0
      %564 = vmatpush1.bf16.msra.mxu0 %v535
      %565 = vmatprep.subr.bf16.mxu0 0
      %566 = vmatpush1.bf16.msra.mxu0 %v536
      %567 = vmatprep.subr.bf16.mxu0 0
      %568 = vmatpush1.bf16.msra.mxu0 %v537
      %569 = vmatprep.subr.bf16.mxu0 0
      %570 = vmatpush1.bf16.msra.mxu0 %v538
      %571 = vmatprep.subr.bf16.mxu0 0
      %572 = vmatpush1.bf16.msra.mxu0 %v561
      %573 = vmatprep.subr.bf16.mxu0 0
      %574 = vmatpush1.bf16.msra.mxu0 0
      %575 = vmatprep.subr.bf16.mxu0 0
      %576 = vmatpush1.bf16.msra.mxu0 0
      %577 = vmatprep.subr.bf16.mxu0 0
      %578 = vmatpush1.bf16.msra.mxu0 0
      %579 = vmatprep.subr.bf16.mxu0 0
      %580 = vmatpush1.bf16.msra.mxu0 0
      %581 = vmatprep.subr.bf16.mxu0 0
      %582 = vmatpush1.bf16.msra.mxu0 0
      %583 = vmatprep.subr.bf16.mxu0 0
      %584 = vmatpush1.bf16.msra.mxu0 0
      %585 = vmatprep.subr.bf16.mxu0 0
      %586 = vmatpush1.bf16.msra.mxu0 0
      %587 = vmatprep.subr.bf16.mxu0 0
      %588 = vmatpush1.bf16.msra.mxu0 0
      %589 = vmatprep.subr.bf16.mxu0 0
      %590 = vmatpush1.bf16.msra.mxu0 0
      %591 = vmatprep.subr.bf16.mxu0 0
      %592 = vmatpush1.bf16.msra.mxu0 0
      %593 = vmatprep.subr.bf16.mxu0 0
      %594 = vmatpush1.bf16.msra.mxu0 0
      %595 = vmatprep.mubr.bf16.mxu0 0
      %596 = vmatmul.mubr.bf16.gmra.mrb[0].mxu0 %v546
      %v597 = vpop.f32.mrb[0].mxu0
      %v598 = vadd.f32 0.0, %v597
      %v599 = vpop.f32.mrb[0].mxu0
      %v600 = vpop.f32.mrb[0].mxu0
      %v601 = vadd.f32 0.0, %v600
      %v602 = vpop.f32.mrb[0].mxu0
      %603 = vmatprep.mubr.bf16.mxu0 0
      %604 = vmatmul.mubr.bf16.gmra.mrb[0].mxu0 %v549
      %v605 = vpop.f32.mrb[0].mxu0
      %v606 = vadd.f32 0.0, %v605
      %v607 = vpop.f32.mrb[0].mxu0
      %v608 = vpop.f32.mrb[0].mxu0
      %v609 = vadd.f32 0.0, %v608
      %v610 = vpop.f32.mrb[0].mxu0
      %611 = vmatprep.mubr.bf16.mxu0 0
      %612 = vmatmul.mubr.bf16.gmra.mrb[0].mxu0 %v552
      %v613 = vpop.f32.mrb[0].mxu0
      %v614 = vadd.f32 0.0, %v613
      %v615 = vpop.f32.mrb[0].mxu0
      %v616 = vpop.f32.mrb[0].mxu0
      %v617 = vadd.f32 0.0, %v616
      %v618 = vpop.f32.mrb[0].mxu0
      %619 = vmatprep.mubr.bf16.mxu0 0
      %620 = vmatmul.mubr.bf16.gmra.mrb[0].mxu0 %v555
      %v621 = vpop.f32.mrb[0].mxu0
      %v622 = vadd.f32 0.0, %v621
      %v623 = vpop.f32.mrb[0].mxu0
      %v624 = vpop.f32.mrb[0].mxu0
      %v625 = vadd.f32 0.0, %v624
      %v626 = vpop.f32.mrb[0].mxu0
      %627 = vdwg.mxu0
      %v628 = vsel %vm444, %v598, 0.0
      %629 = vadd.xlane.f32.xlu0 %v628
      %v630 = vpop.xlane.xlu0 %629
      %v631 = vsel %vm444, %v601, 0.0
      %632 = vadd.xlane.f32.xlu0 %v631
      %v633 = vpop.xlane.xlu0 %632
      %v634 = vsel %vm444, %v606, 0.0
      %635 = vadd.xlane.f32.xlu0 %v634
      %v636 = vpop.xlane.xlu0 %635
      %v637 = vsel %vm444, %v609, 0.0
      %638 = vadd.xlane.f32.xlu0 %v637
      %v639 = vpop.xlane.xlu0 %638
      %v640 = vsel %vm444, %v614, 0.0
      %641 = vadd.xlane.f32.xlu0 %v640
      %v642 = vpop.xlane.xlu0 %641
      %v643 = vsel %vm444, %v617, 0.0
      %644 = vadd.xlane.f32.xlu0 %v643
      %v645 = vpop.xlane.xlu0 %644
      %v646 = vsel %vm444, %v622, 0.0
      %647 = vadd.xlane.f32.xlu0 %v646
      %v648 = vpop.xlane.xlu0 %647
      %v649 = vsel %vm444, %v625, 0.0
      %650 = vadd.xlane.f32.xlu0 %v649
      %v651 = vpop.xlane.xlu0 %650
      %v652 = vrcp.pop 32.0
      %v653 = vmul.f32 %v630, %v652
      %v654 = vmul.f32 %v633, %v652
      %v655 = vmul.f32 %v636, %v652
      %v656 = vmul.f32 %v639, %v652
      %v657 = vmul.f32 %v642, %v652
      %v658 = vmul.f32 %v645, %v652
      %v659 = vmul.f32 %v648, %v652
      %v660 = vmul.f32 %v651, %v652
      %v661 = vsub.f32 %v598, %v653
      %v662 = vsub.f32 %v601, %v654
      %v663 = vsub.f32 %v606, %v655
      %v664 = vsub.f32 %v609, %v656
      %v665 = vsub.f32 %v614, %v657
      %v666 = vsub.f32 %v617, %v658
      %v667 = vsub.f32 %v622, %v659
      %v668 = vsub.f32 %v625, %v660
      %v669 = vmul.f32 %v661, %v661
      %v670 = vmul.f32 %v662, %v662
      %v671 = vmul.f32 %v663, %v663
      %v672 = vmul.f32 %v664, %v664
      %v673 = vmul.f32 %v665, %v665
      %v674 = vmul.f32 %v666, %v666
      %v675 = vmul.f32 %v667, %v667
      %v676 = vmul.f32 %v668, %v668
      %v677 = vsel %vm444, %v669, 0.0
      %678 = vadd.xlane.f32.xlu0 %v677
      %v679 = vpop.xlane.xlu0 %678
      %v680 = vsel %vm444, %v670, 0.0
      %681 = vadd.xlane.f32.xlu0 %v680
      %v682 = vpop.xlane.xlu0 %681
      %v683 = vsel %vm444, %v671, 0.0
      %684 = vadd.xlane.f32.xlu0 %v683
      %v685 = vpop.xlane.xlu0 %684
      %v686 = vsel %vm444, %v672, 0.0
      %687 = vadd.xlane.f32.xlu0 %v686
      %v688 = vpop.xlane.xlu0 %687
      %v689 = vsel %vm444, %v673, 0.0
      %690 = vadd.xlane.f32.xlu0 %v689
      %v691 = vpop.xlane.xlu0 %690
      %v692 = vsel %vm444, %v674, 0.0
      %693 = vadd.xlane.f32.xlu0 %v692
      %v694 = vpop.xlane.xlu0 %693
      %v695 = vsel %vm444, %v675, 0.0
      %696 = vadd.xlane.f32.xlu0 %v695
      %v697 = vpop.xlane.xlu0 %696
      %v698 = vsel %vm444, %v676, 0.0
      %699 = vadd.xlane.f32.xlu0 %v698
      %v700 = vpop.xlane.xlu0 %699
      %v701 = vmul.f32 %v679, %v652
      %v702 = vmul.f32 %v682, %v652
      %v703 = vmul.f32 %v685, %v652
      %v704 = vmul.f32 %v688, %v652
      %v705 = vmul.f32 %v691, %v652
      %v706 = vmul.f32 %v694, %v652
      %v707 = vmul.f32 %v697, %v652
      %v708 = vmul.f32 %v700, %v652
      %v709 = vadd.f32 %v701, 1e-05
      %v710 = vadd.f32 %v702, 1e-05
      %v711 = vadd.f32 %v703, 1e-05
      %v712 = vadd.f32 %v704, 1e-05
      %v713 = vadd.f32 %v705, 1e-05
      %v714 = vadd.f32 %v706, 1e-05
      %v715 = vadd.f32 %v707, 1e-05
      %v716 = vadd.f32 %v708, 1e-05
      %v717 = vrsqrt.pop %v709
      %v718 = vrsqrt.pop %v710
      %v719 = vrsqrt.pop %v711
      %v720 = vrsqrt.pop %v712
      %v721 = vrsqrt.pop %v713
      %v722 = vrsqrt.pop %v714
      %v723 = vrsqrt.pop %v715
      %v724 = vrsqrt.pop %v716
      %v725 = vmul.f32 %v661, %v717
      %v726 = vmul.f32 %v662, %v718
      %v727 = vmul.f32 %v663, %v719
      %v728 = vmul.f32 %v664, %v720
      %v729 = vmul.f32 %v665, %v721
      %v730 = vmul.f32 %v666, %v722
      %v731 = vmul.f32 %v667, %v723
      %v732 = vmul.f32 %v668, %v724
      %v733 = vld [vmem:[%s2] sm:$0x1]
      %v735 = vlaneseq
      %v736 = vshrl.u32 %v735, 7
      %v737 = vsub.s32 0, %v736
      %v738 = vrot.slane %v733, %v737
      %v740 = vmul.f32 %v725, %v738
      %v741 = vmul.f32 %v726, %v738
      %v742 = vmul.f32 %v727, %v738
      %v743 = vmul.f32 %v728, %v738
      %v744 = vmul.f32 %v729, %v738
      %v745 = vmul.f32 %v730, %v738
      %v746 = vmul.f32 %v731, %v738
      %v747 = vmul.f32 %v732, %v738
      %v748 = vld [vmem:[%s3] sm:$0x1]
      %v750 = vlaneseq
      %v751 = vshrl.u32 %v750, 7
      %v752 = vsub.s32 0, %v751
      %v753 = vrot.slane %v748, %v752
      %v755 = vadd.f32 %v740, %v753
      %v756 = vadd.f32 %v741, %v753
      %v757 = vadd.f32 %v742, %v753
      %v758 = vadd.f32 %v743, %v753
      %v759 = vadd.f32 %v744, %v753
      %v760 = vadd.f32 %v745, %v753
      %v761 = vadd.f32 %v746, %v753
      %v762 = vadd.f32 %v747, %v753
      %763 = vst.msk [vmem:[%s233] sm:$0xff] %vm444, %v755
      %764 = vst.msk [vmem:[%s233 + $0x8] sm:$0xff] %vm444, %v756
      %765 = vst.msk [vmem:[%s233 + $0x10] sm:$0xff] %vm444, %v757
      %766 = vst.msk [vmem:[%s233 + $0x18] sm:$0xff] %vm444, %v758
      %767 = vst.msk [vmem:[%s233 + $0x20] sm:$0xff] %vm444, %v759
      %768 = vst.msk [vmem:[%s233 + $0x28] sm:$0xff] %vm444, %v760
      %769 = vst.msk [vmem:[%s233 + $0x30] sm:$0xff] %vm444, %v761
      %770 = vst.msk [vmem:[%s233 + $0x38] sm:$0xff] %vm444, %v762
      %s771 = smul.u32 8, %s20
      %p772 = scmp.lt.s32.totalorder %s19, 1
      %s773 = scalar_select %p772, %s19, 1
      %p774 = scmp.lt.s32.totalorder %s771, 7
      %s775 = scalar_select %p774, %s771, 7
      %s776 = smul.addr %s773, 8
      %s777 = sadd.s32 %s775, %s776
      %s778 = smul.addr %s777, 8
      %s779 = scalar_lea.vmem %s4, %s778
      // Predicated region
      $region37: #{downsamples.1} parent=35 // pred_check
        %p780 = pneg %p138
      $region38: #{downsamples.1} parent=35 // pred_check_branch
        %782 = sbr.rel (%p780) target = $region40
      $region39: #{downsamples.1} parent=35 // pred_region
        %s783 = smul.u32 8, %s20
      $region40: #{downsamples.1} parent=35 // pred_fallthru
        _
    $region36: #{downsamples.1} parent=5 // pred_fallthru
      _
    %p784 = scmp.le.s32.totalorder 2, %s10
    // Predicated region
    $region41: #{downsamples.1} parent=5 // pred_check
      %p785 = pneg %p784
    $region42: #{downsamples.1} parent=5 // pred_check_branch
      %787 = sbr.rel (%p785) target = $region44
    $region43: #{downsamples.1} parent=5 // pred_region
      %s788 = ssub.s32 %s10, 2
      // Predicated region
      $region45: #{downsamples.1} parent=43 // pred_check
        %p789 = pneg %p144
      $region46: #{downsamples.1} parent=43 // pred_check_branch
        %791 = sbr.rel (%p789) target = $region48
      $region47: #{downsamples.1} parent=43 // pred_region
        %s792 = smul.u32 8, %s22
        %p793 = scmp.lt.s32.totalorder %s21, 1
        %s794 = scalar_select %p793, %s21, 1
        %p795 = scmp.lt.s32.totalorder %s792, 7
        %s796 = scalar_select %p795, %s792, 7
        %s797 = smul.addr %s794, 8
        %s798 = sadd.s32 %s796, %s797
        %s799 = smul.addr %s798, 8
        %s800 = scalar_lea.vmem %s4, %s799
      $region48: #{downsamples.1} parent=43 // pred_fallthru
        _
    $region44: #{downsamples.1} parent=5 // pred_fallthru
      _
  $region6: #{downsamples.1} parent=0 // loop_footer
    %s14 = sadd.s32 1, %s10
  $region7: #{downsamples.1} parent=0 // loop_footer_branch
    %9 = sbr.rel target = $region3
  $region8: #{downsamples.1} parent=0 // loop_exit
    _

</llo_original>
